<compile_context>
chip_gen: v7x
topology: tpu7x:2x2x1
jax: 0.10.0
libtpu: 0.0.40
codegen_flags: <defaults>
</compile_context>

<pallas_src>
import functools

import jax
import jax.numpy as jnp
from jax.experimental import pallas as pl
from jax.experimental.pallas import tpu as pltpu


def _pool_mixer_kernel(x_ref, o_ref, *, window_size, seq_len, out_len):
    # x_ref: (TB, N, Ct) VMEM tile; o_ref: (TB, L, Ct) VMEM tile.
    pad = window_size // 2
    inv_w = 1.0 / window_size

    # Local row index along the (output) sequence axis, shared by all taps/batches.
    row = jax.lax.broadcasted_iota(jnp.int32, (out_len, 1), 0)

    for b in range(x_ref.shape[0]):          # static unroll over packed batch elems
        x = x_ref[b].astype(jnp.float32)     # (N, Ct)
        if out_len > seq_len:                # even window: one extra zero row
            x = jnp.pad(x, ((0, out_len - seq_len), (0, 0)))

        acc = None
        for k in range(window_size):         # w is small (typically 3): unroll taps
            s = k - pad                      # out[j] += x[j + s], zero outside [0, N)
            shift = (-s) % out_len           # roll so row j holds x[(j + s) mod L]
            tap = x if shift == 0 else pltpu.roll(x, shift, axis=0)
            if s < 0:                        # rows j < -s read the left zero pad
                tap = jnp.where(row >= -s, tap, 0.0)
            elif s > 0:                      # rows j >= N - s read the right zero pad
                tap = jnp.where(row < seq_len - s, tap, 0.0)
            acc = tap if acc is None else acc + tap

        # count_include_pad=True -> always divide by the window size.
        o_ref[b] = (acc * inv_w).astype(o_ref.dtype)


_LANE = 128
_TARGET_BLOCK_BYTES = 2 * 1024 * 1024    # ~2 MiB f32 working set per block
_MAX_BATCH_PACK = 8                      # cap on batch elements packed per block


def _choose_tiles(B, N, C, out_len):
    """Pick (tile_b, tile_c): lane-dense channel tiles, blocks near the target size."""
    rows = max(N, out_len)
    if C % _LANE == 0:
        cap = max(_LANE, (_TARGET_BLOCK_BYTES // (rows * 4)) // _LANE * _LANE)
        tile_c = _LANE
        for cand in range(_LANE, min(C, cap) + 1, _LANE):
            if C % cand == 0:
                tile_c = cand
    else:
        # Last block dim == full array dim is always legal; for tiny C the masked
        # partial stores are irrelevant and not worth an extra HBM transpose pass.
        tile_c = C

    tile_b = 1
    for cand in range(1, min(B, _MAX_BATCH_PACK) + 1):
        if B % cand == 0 and cand * rows * tile_c * 4 <= _TARGET_BLOCK_BYTES:
            tile_b = cand
    return tile_b, tile_c


def pool_mixer(x, window_size):
    """x: (B, N, C) -> (B, L, C) average-pooled along the sequence axis."""
    B, N, C = x.shape
    pad = window_size // 2
    out_len = N + 2 * pad - window_size + 1
    itemsize = jnp.dtype(x.dtype).itemsize

    tile_b, tile_c = _choose_tiles(B, N, C, out_len)
    num_b = B // tile_b
    num_c = C // tile_c

    # VMEM budget: double-buffered in/out blocks + generous in-kernel f32 temporaries.
    block_in = tile_b * N * tile_c * itemsize
    block_out = tile_b * out_len * tile_c * itemsize
    temps = 4 * tile_b * max(N, out_len) * tile_c * 4
    vmem_limit = int(min(max(2 * (block_in + block_out) + temps + (1 << 20), 32 << 20),
                         48 << 20))

    kernel = functools.partial(
        _pool_mixer_kernel, window_size=window_size, seq_len=N, out_len=out_len
    )
    cost = pl.CostEstimate(
        flops=window_size * B * out_len * C,
        transcendentals=0,
        bytes_accessed=(B * N * C + B * out_len * C) * itemsize,
    )
    return pl.pallas_call(
        kernel,
        out_shape=jax.ShapeDtypeStruct((B, out_len, C), x.dtype),
        grid_spec=pltpu.PrefetchScalarGridSpec(
            num_scalar_prefetch=0,
            grid=(num_b, num_c),
            in_specs=[pl.BlockSpec((tile_b, N, tile_c), lambda b, c: (b, 0, c))],
            out_specs=pl.BlockSpec((tile_b, out_len, tile_c), lambda b, c: (b, 0, c)),
        ),
        compiler_params=pltpu.CompilerParams(
            dimension_semantics=("parallel", "parallel"),
            vmem_limit_bytes=vmem_limit,
        ),
        cost_estimate=cost,
    )(x)


def _reference_pool_mixer(x, window_size):
    """Pure-JAX reference replicating F.avg_pool1d(k, stride=1, pad=k//2)."""
    B, N, C = x.shape
    pad = window_size // 2
    out_len = N + 2 * pad - window_size + 1
    xp = jnp.pad(x.astype(jnp.float32), ((0, 0), (pad, pad), (0, 0)))
    acc = jnp.zeros((B, out_len, C), jnp.float32)
    for k in range(window_size):
        acc = acc + xp[:, k:k + out_len, :]
    return (acc / window_size).astype(x.dtype)


if __name__ == "__main__":
    key = jax.random.PRNGKey(0)

    tests = [
        # (B, N, C, window_size, dtype)
        (2, 16, 8, 3, jnp.float32),      # canonical small PoolMixer shape
        (16, 16, 8, 3, jnp.float32),     # exercises batch packing + multi-step grid
        (2, 32, 128, 5, jnp.bfloat16),   # lane-dense channel tile, larger window
    ]
    for (B, N, C, w, dtype) in tests:
        key, sub = jax.random.split(key)
        x = jax.random.normal(sub, (B, N, C), dtype=jnp.float32).astype(dtype)

        out = jax.block_until_ready(pool_mixer(x, w))
        ref = _reference_pool_mixer(x, w)

        assert out.shape == ref.shape, (out.shape, ref.shape)
        tol = 1e-5 if dtype == jnp.float32 else 2e-2
        assert jnp.allclose(out.astype(jnp.float32), ref.astype(jnp.float32),
                            atol=tol, rtol=tol), ("mismatch", B, N, C, w, dtype)

    print("KERNEL_OK")
</pallas_src>

<mosaic_0001>
module attributes {stable_mosaic.version = 11 : i64} {
  func.func @_pool_mixer_kernel(%arg0: i32, %arg1: i32, %arg2: memref<2x16x8xf32, #tpu.memory_space<vmem>>, %arg3: memref<2x16x8xf32, #tpu.memory_space<vmem>>) attributes {dimension_semantics = [#tpu.dimension_semantics<parallel>, #tpu.dimension_semantics<parallel>], iteration_bounds = array<i64: 1, 1>, scalar_prefetch = 0 : i64, scratch_operands = 0 : i64, tpu.core_type = #tpu.core_type<tc>, window_params = [{transform_indices = @transform_0, window_bounds = array<i64: 2, 16, 8>}, {transform_indices = @transform_1, window_bounds = array<i64: 2, 16, 8>}]} {
    %0 = tpu.iota {dimensions = array<i32: 0>} : vector<16x1xi32>
    %c0 = arith.constant 0 : index
    %c0_0 = arith.constant 0 : index
    %c0_1 = arith.constant 0 : index
    %1 = vector.load %arg2[%c0, %c0_0, %c0_1] : memref<2x16x8xf32, #tpu.memory_space<vmem>>, vector<1x16x8xf32>
    %2 = vector.shape_cast %1 : vector<1x16x8xf32> to vector<16x8xf32>
    %c1_i32 = arith.constant 1 : i32
    %3 = tpu.dynamic_rotate %2 by %c1_i32 dim 0 : vector<16x8xf32>, i32 -> vector<16x8xf32>
    %c1_i32_2 = arith.constant 1 : i32
    %4 = vector.broadcast %c1_i32_2 : i32 to vector<16x1xi32>
    %5 = arith.cmpi sge, %0, %4 : vector<16x1xi32>
    %cst = arith.constant 0.000000e+00 : f32
    %6 = vector.shape_cast %5 : vector<16x1xi1> to vector<16x1xi1>
    %7 = vector.broadcast %6 : vector<16x1xi1> to vector<16x8xi1>
    %8 = vector.broadcast %cst : f32 to vector<16x8xf32>
    %9 = arith.select %7, %3, %8 : vector<16x8xi1>, vector<16x8xf32>
    %10 = arith.addf %9, %2 : vector<16x8xf32>
    %c15_i32 = arith.constant 15 : i32
    %11 = tpu.dynamic_rotate %2 by %c15_i32 dim 0 : vector<16x8xf32>, i32 -> vector<16x8xf32>
    %c15_i32_3 = arith.constant 15 : i32
    %12 = vector.broadcast %c15_i32_3 : i32 to vector<16x1xi32>
    %13 = arith.cmpi slt, %0, %12 : vector<16x1xi32>
    %cst_4 = arith.constant 0.000000e+00 : f32
    %14 = vector.shape_cast %13 : vector<16x1xi1> to vector<16x1xi1>
    %15 = vector.broadcast %14 : vector<16x1xi1> to vector<16x8xi1>
    %16 = vector.broadcast %cst_4 : f32 to vector<16x8xf32>
    %17 = arith.select %15, %11, %16 : vector<16x8xi1>, vector<16x8xf32>
    %18 = arith.addf %10, %17 : vector<16x8xf32>
    %cst_5 = arith.constant 0.333333343 : f32
    %19 = vector.broadcast %cst_5 : f32 to vector<16x8xf32>
    %20 = arith.mulf %18, %19 : vector<16x8xf32>
    %c0_6 = arith.constant 0 : index
    %c0_7 = arith.constant 0 : index
    %c0_8 = arith.constant 0 : index
    %21 = vector.load %arg3[%c0_6, %c0_7, %c0_8] : memref<2x16x8xf32, #tpu.memory_space<vmem>>, vector<1x16x8xf32>
    %22 = vector.shape_cast %21 : vector<1x16x8xf32> to vector<16x8xf32>
    %23 = vector.shape_cast %20 : vector<16x8xf32> to vector<1x16x8xf32>
    tpu.vector_store %arg3[%c0_6, %c0_7, %c0_8], %23 {strides = array<i32>} : memref<2x16x8xf32, #tpu.memory_space<vmem>>, vector<1x16x8xf32>,
    %c1 = arith.constant 1 : index
    %c0_9 = arith.constant 0 : index
    %c0_10 = arith.constant 0 : index
    %24 = vector.load %arg2[%c1, %c0_9, %c0_10] : memref<2x16x8xf32, #tpu.memory_space<vmem>>, vector<1x16x8xf32>
    %25 = vector.shape_cast %24 : vector<1x16x8xf32> to vector<16x8xf32>
    %c1_i32_11 = arith.constant 1 : i32
    %26 = tpu.dynamic_rotate %25 by %c1_i32_11 dim 0 : vector<16x8xf32>, i32 -> vector<16x8xf32>
    %c1_i32_12 = arith.constant 1 : i32
    %27 = vector.broadcast %c1_i32_12 : i32 to vector<16x1xi32>
    %28 = arith.cmpi sge, %0, %27 : vector<16x1xi32>
    %cst_13 = arith.constant 0.000000e+00 : f32
    %29 = vector.shape_cast %28 : vector<16x1xi1> to vector<16x1xi1>
    %30 = vector.broadcast %29 : vector<16x1xi1> to vector<16x8xi1>
    %31 = vector.broadcast %cst_13 : f32 to vector<16x8xf32>
    %32 = arith.select %30, %26, %31 : vector<16x8xi1>, vector<16x8xf32>
    %33 = arith.addf %32, %25 : vector<16x8xf32>
    %c15_i32_14 = arith.constant 15 : i32
    %34 = tpu.dynamic_rotate %25 by %c15_i32_14 dim 0 : vector<16x8xf32>, i32 -> vector<16x8xf32>
    %c15_i32_15 = arith.constant 15 : i32
    %35 = vector.broadcast %c15_i32_15 : i32 to vector<16x1xi32>
    %36 = arith.cmpi slt, %0, %35 : vector<16x1xi32>
    %cst_16 = arith.constant 0.000000e+00 : f32
    %37 = vector.shape_cast %36 : vector<16x1xi1> to vector<16x1xi1>
    %38 = vector.broadcast %37 : vector<16x1xi1> to vector<16x8xi1>
    %39 = vector.broadcast %cst_16 : f32 to vector<16x8xf32>
    %40 = arith.select %38, %34, %39 : vector<16x8xi1>, vector<16x8xf32>
    %41 = arith.addf %33, %40 : vector<16x8xf32>
    %cst_17 = arith.constant 0.333333343 : f32
    %42 = vector.broadcast %cst_17 : f32 to vector<16x8xf32>
    %43 = arith.mulf %41, %42 : vector<16x8xf32>
    %c1_18 = arith.constant 1 : index
    %c0_19 = arith.constant 0 : index
    %c0_20 = arith.constant 0 : index
    %44 = vector.load %arg3[%c1_18, %c0_19, %c0_20] : memref<2x16x8xf32, #tpu.memory_space<vmem>>, vector<1x16x8xf32>
    %45 = vector.shape_cast %44 : vector<1x16x8xf32> to vector<16x8xf32>
    %46 = vector.shape_cast %43 : vector<16x8xf32> to vector<1x16x8xf32>
    tpu.vector_store %arg3[%c1_18, %c0_19, %c0_20], %46 {strides = array<i32>} : memref<2x16x8xf32, #tpu.memory_space<vmem>>, vector<1x16x8xf32>,
    return
  }
  func.func @transform_0(%arg0: i32, %arg1: i32) -> (i32, i32, i32) {
    %c0_i32 = arith.constant 0 : i32
    %c0_i32_0 = arith.constant 0 : i32
    return %arg0, %c0_i32, %arg1 : i32, i32, i32
  }
  func.func @transform_1(%arg0: i32, %arg1: i32) -> (i32, i32, i32) {
    %c0_i32 = arith.constant 0 : i32
    %c0_i32_0 = arith.constant 0 : i32
    return %arg0, %c0_i32, %arg1 : i32, i32, i32
  }
}

</mosaic_0001>

<llo_original>
// kernel: tpu_custom_call.1
$region0: #{tpu_custom_call.1}
  #allocation0 [shape = 'u32[]', space=smem, size = 0x4, offset = 0x4, fixed_abs, tag = 'smem constant byte address 0x4 - core index']
  #allocation1 [shape = 'u32[144,128]{1,0:T(1,128)}', space=vmem, size = 0x12000, scoped, tag = 'internal scratch']
  %s0 = inlined_call_operand.vmem [shape: f32[2,16,8], index: 0, kind: input, shape index: {}]
  %s1 = inlined_call_operand.vmem [shape: f32[2,16,8], index: 1, kind: output, shape index: {}]
  %s2 = sld [smem:[#allocation0]]
  $region14: #{tpu_custom_call.1} parent=0
    _
  %s4 = ssub.s32 1, %s2
  %s5 = scalar_select 0, %s4, %s2
  // Predicated region
  $region2: #{tpu_custom_call.1} parent=0 // pred_check
    _
  $region3: #{tpu_custom_call.1} parent=0 // pred_check_branch
    %7 = sbr.rel (0) target = $region5
  $region4: #{tpu_custom_call.1} parent=0 // pred_region
    _
  $region5: #{tpu_custom_call.1} parent=0 // pred_fallthru
    _
  %v8 = vlaneseq
  %v9 = vshrl.u32 %v8, 7
  %v10 = vadd.s32 %v9, 8
  %v11 = vld [vmem:[%s0] sm:$0xff]
  %v12 = vld [vmem:[%s0 + $0x8] sm:$0xff]
  %v13 = vrot.slane %v11, 7
  %v14 = vrot.slane %v12, 7
  %vm15 = vcmp.lt.s32.totalorder %v9, 1
  %v16 = vsel %vm15, %v13, %v14
  %v17 = vsel %vm15, %v14, %v13
  %vm18 = vcmp.ge.s32.totalorder %v9, 1
  %vm19 = vcmp.ge.s32.totalorder %v10, 1
  %v20 = vsel %vm18, 1, 0
  %v21 = vsel %vm19, 1, 0
  %vm22 = vcmp.eq.s32.totalorder %v20, 1
  %vm23 = vcmp.eq.s32.totalorder %v21, 1
  %v24 = vsel %vm22, %v17, 0.0
  %v25 = vsel %vm23, %v16, 0.0
  %v26 = vadd.f32 %v24, %v11
  %v27 = vadd.f32 %v25, %v12
  %v28 = vrot.slane %v11, 1
  %v29 = vrot.slane %v12, 1
  %vm30 = vcmp.lt.s32.totalorder %v9, 7
  %v31 = vsel %vm30, %v28, %v29
  %v32 = vsel %vm30, %v29, %v28
  %vm33 = vcmp.lt.s32.totalorder %v9, 15
  %vm34 = vcmp.lt.s32.totalorder %v10, 15
  %v35 = vsel %vm33, 1, 0
  %v36 = vsel %vm34, 1, 0
  %vm37 = vcmp.eq.s32.totalorder %v35, 1
  %vm38 = vcmp.eq.s32.totalorder %v36, 1
  %v39 = vsel %vm37, %v31, 0.0
  %v40 = vsel %vm38, %v32, 0.0
  %v41 = vadd.f32 %v26, %v39
  %v42 = vadd.f32 %v27, %v40
  %v43 = vmul.f32 %v41, 0.33333334
  %v44 = vmul.f32 %v42, 0.33333334
  %vm45 = vcmask 64512
  %46 = vst.msk [vmem:[%s1] sm:$0xff] %vm45, %v43
  %47 = vst.msk [vmem:[%s1 + $0x8] sm:$0xff] %vm45, %v44
  %s48 = scalar_lea.vmem %s0, 16
  %v49 = vld [vmem:[%s48] sm:$0xff]
  %v50 = vld [vmem:[%s48 + $0x8] sm:$0xff]
  %v51 = vrot.slane %v49, 7
  %v52 = vrot.slane %v50, 7
  %v53 = vsel %vm15, %v51, %v52
  %v54 = vsel %vm15, %v52, %v51
  %v55 = vsel %vm22, %v54, 0.0
  %v56 = vsel %vm23, %v53, 0.0
  %v57 = vadd.f32 %v55, %v49
  %v58 = vadd.f32 %v56, %v50
  %v59 = vrot.slane %v49, 1
  %v60 = vrot.slane %v50, 1
  %v61 = vsel %vm30, %v59, %v60
  %v62 = vsel %vm30, %v60, %v59
  %v63 = vsel %vm37, %v61, 0.0
  %v64 = vsel %vm38, %v62, 0.0
  %v65 = vadd.f32 %v57, %v63
  %v66 = vadd.f32 %v58, %v64
  %v67 = vmul.f32 %v65, 0.33333334
  %v68 = vmul.f32 %v66, 0.33333334
  %s69 = scalar_lea.vmem %s1, 16
  %70 = vst.msk [vmem:[%s69] sm:$0xff] %vm45, %v67
  %71 = vst.msk [vmem:[%s69 + $0x8] sm:$0xff] %vm45, %v68
  // Predicated region
  $region6: #{tpu_custom_call.1} parent=0 // pred_check
    _
  $region7: #{tpu_custom_call.1} parent=0 // pred_check_branch
    %73 = sbr.rel (0) target = $region9
  $region8: #{tpu_custom_call.1} parent=0 // pred_region
    _
  $region9: #{tpu_custom_call.1} parent=0 // pred_fallthru
    _
  // Predicated region
  $region10: #{tpu_custom_call.1} parent=0 // pred_check
    _
  $region11: #{tpu_custom_call.1} parent=0 // pred_check_branch
    %75 = sbr.rel (0) target = $region13
  $region12: #{tpu_custom_call.1} parent=0 // pred_region
    _
  $region13: #{tpu_custom_call.1} parent=0 // pred_fallthru
    _

</llo_original>
